<compile_context>
chip_gen: v7x
topology: tpu7x:2x2x1
jax: 0.10.0
libtpu: 0.0.40
codegen_flags: <defaults>
</compile_context>

<pallas_src>
import functools
import numpy as np
import jax
import jax.numpy as jnp
from jax.experimental import pallas as pl
from jax.experimental.pallas import tpu as pltpu


# ----------------------------------------------------------------------------
# Kernel 1: fused Q/K/V in-projection (one call, grid over {q, k, v})
# ----------------------------------------------------------------------------

def _qkv_proj_kernel(x_ref, w_ref, b_ref, o_ref):
    # o = x @ w_t + b   (weights pre-transposed to (in, out) at module init)
    o_ref[0] = (
        jnp.dot(x_ref[0], w_ref[0], preferred_element_type=jnp.float32)
        + b_ref[0]
    ).astype(o_ref.dtype)


def fused_qkv_projection(x_stacked, w_t_stacked, b_stacked):
    """x_stacked: (3, N, E), w_t_stacked: (3, E, E), b_stacked: (3, 1, E)."""
    three, n, e = x_stacked.shape
    return pl.pallas_call(
        _qkv_proj_kernel,
        out_shape=jax.ShapeDtypeStruct((three, n, e), jnp.float32),
        grid_spec=pltpu.PrefetchScalarGridSpec(
            num_scalar_prefetch=0,
            grid=(three,),
            in_specs=[
                pl.BlockSpec((1, n, e), lambda i: (i, 0, 0)),
                pl.BlockSpec((1, e, e), lambda i: (i, 0, 0)),
                pl.BlockSpec((1, 1, e), lambda i: (i, 0, 0)),
            ],
            out_specs=pl.BlockSpec((1, n, e), lambda i: (i, 0, 0)),
        ),
        compiler_params=pltpu.CompilerParams(dimension_semantics=("parallel",)),
    )(x_stacked, w_t_stacked, b_stacked)


# ----------------------------------------------------------------------------
# Kernel 2: masked multi-head attention + head-averaged weights + out-projection
#           (grid over batch; all heads per step)
# ----------------------------------------------------------------------------

def _attn_outproj_kernel(q_ref, k_ref, v_ref, m_ref, wo_ref, bo_ref,
                         r_ref, w_ref, *, inv_heads):
    q = q_ref[0]            # (H, T, D)  -- already scaled by 1/sqrt(D) via Wq
    k = k_ref[0]            # (H, T, D)
    v = v_ref[0]            # (H, T, D)
    m = m_ref[...]          # (H, T, T) float, 1.0 == masked

    # scores per head (batched matmul over heads)
    s = jnp.einsum('hqd,hkd->hqk', q, k, preferred_element_type=jnp.float32)
    # masked_fill(mask, -inf) semantics (finite sentinel -> exp underflows to 0)
    s = jnp.where(m > 0.5, jnp.float32(-1e30), s)

    mx = jnp.max(s, axis=-1, keepdims=True)
    ex = jnp.exp(s - mx)
    denom = jnp.sum(ex, axis=-1, keepdims=True)
    p = ex * pl.reciprocal(denom, approx=True)            # (H, T, T) softmax

    # head-averaged attention weights computed in-kernel (only (T, T) written)
    w_ref[0] = (jnp.sum(p, axis=0) * inv_heads).astype(w_ref.dtype)

    # context + fused out-projection:  r = sum_h (p_h @ v_h) @ Wo_t[h]  + b_o
    ctx = jnp.einsum('hqk,hkd->hqd', p, v, preferred_element_type=jnp.float32)
    per_head = jnp.einsum('hqd,hde->hqe', ctx, wo_ref[...],
                          preferred_element_type=jnp.float32)
    r = jnp.sum(per_head, axis=0) + bo_ref[...]            # (T, E)
    r_ref[0] = r.astype(r_ref.dtype)


def attention_forward(qh, kh, vh, mask_f, w_out_hde, b_out, num_heads):
    """qh/kh/vh: (B, H, T, D); mask_f: (H, T, T); w_out_hde: (H, D, E);
    b_out: (1, E).  Returns (r (B, T, E), w_avg (B, T, T))."""
    b, h, t, d = qh.shape
    e = h * d
    return pl.pallas_call(
        functools.partial(_attn_outproj_kernel, inv_heads=1.0 / num_heads),
        out_shape=(
            jax.ShapeDtypeStruct((b, t, e), jnp.float32),
            jax.ShapeDtypeStruct((b, t, t), jnp.float32),
        ),
        grid_spec=pltpu.PrefetchScalarGridSpec(
            num_scalar_prefetch=0,
            grid=(b,),
            in_specs=[
                pl.BlockSpec((1, h, t, d), lambda i: (i, 0, 0, 0)),
                pl.BlockSpec((1, h, t, d), lambda i: (i, 0, 0, 0)),
                pl.BlockSpec((1, h, t, d), lambda i: (i, 0, 0, 0)),
                pl.BlockSpec((h, t, t), lambda i: (0, 0, 0)),
                pl.BlockSpec((h, d, e), lambda i: (0, 0, 0)),
                pl.BlockSpec((1, e), lambda i: (0, 0)),
            ],
            out_specs=(
                pl.BlockSpec((1, t, e), lambda i: (i, 0, 0)),
                pl.BlockSpec((1, t, t), lambda i: (i, 0, 0)),
            ),
        ),
        compiler_params=pltpu.CompilerParams(dimension_semantics=("parallel",)),
    )(qh, kh, vh, mask_f, w_out_hde, b_out)


# ----------------------------------------------------------------------------
# Module
# ----------------------------------------------------------------------------

def _mask_matrix(num_heads, temporal_scale, window_size):
    """Identical to the PyTorch _mask_matrix loop (True == masked)."""
    m = np.ones((1, num_heads, temporal_scale, temporal_scale), dtype=bool)
    w_len = window_size
    local_len = 8
    if local_len > 0:
        for i in range(local_len):
            for j in range(temporal_scale):
                for k in range(w_len):
                    idx = min(max(j - w_len // 2 + k, 0), temporal_scale - 1)
                    m[0, i, j, idx] = False
        if local_len < num_heads:
            for i in range(local_len, num_heads):
                m[0, i] = False
    else:
        for i in range(num_heads):
            m[0, i] = False
    return m


class GlobalLocalAttention:
    def __init__(self, input_dim, num_heads, dropout, temporal_scale, window_size,
                 rng_key):
        assert input_dim % num_heads == 0
        self.input_dim = input_dim
        self.num_heads = num_heads
        self.head_dim = input_dim // num_heads
        self.temporal_scale = temporal_scale
        self.dropout = dropout  # unused at inference

        keys = jax.random.split(rng_key, 4)
        e, h, d = input_dim, num_heads, input_dim // num_heads
        bound = 1.0 / np.sqrt(e)
        # fairseq-style multihead attention parameters (deterministic init).
        self.in_proj_weight = jax.random.uniform(
            keys[0], (3 * e, e), jnp.float32, -bound, bound)
        self.in_proj_bias = jnp.zeros((3 * e,), jnp.float32)
        self.out_proj_weight = jax.random.uniform(
            keys[1], (e, e), jnp.float32, -bound, bound)
        self.out_proj_bias = jnp.zeros((e,), jnp.float32)

        # Parameters present in __init__ but unused by forward (kept for fidelity).
        tb = 1.0 / np.sqrt(temporal_scale)
        self.linear_weight = jax.random.uniform(
            keys[2], (temporal_scale, temporal_scale), jnp.float32, -tb, tb)
        self.linear_bias = jnp.zeros((temporal_scale,), jnp.float32)
        self.norm_weight = jnp.ones((temporal_scale,), jnp.float32)
        self.norm_bias = jnp.zeros((temporal_scale,), jnp.float32)

        mask_np = _mask_matrix(num_heads, temporal_scale, window_size)
        self.mask_matrix = jnp.asarray(mask_np, dtype=bool)          # (1,H,T,T)
        # Compact per-head float mask for the kernel (no batch replication).
        self.mask_f = jnp.asarray(mask_np[0], dtype=jnp.float32)     # (H,T,T)

        # --- one-time weight pre-processing (no per-call XLA transposes) ------
        scale = 1.0 / float(np.sqrt(d))
        wq = self.in_proj_weight[:e]
        wk = self.in_proj_weight[e:2 * e]
        wv = self.in_proj_weight[2 * e:]
        bq = self.in_proj_bias[:e]
        bk = self.in_proj_bias[e:2 * e]
        bv = self.in_proj_bias[2 * e:]
        # torch linear: y = x @ W.T + b ; fold 1/sqrt(d) scale into the Q branch.
        self.w_in_t = jnp.stack([wq.T * scale, wk.T, wv.T])           # (3, E, E)
        self.b_in = jnp.stack([bq * scale, bk, bv]).reshape(3, 1, e)  # (3, 1, E)
        # out-proj weight reshaped so the kernel can contract per head:
        # W_out.T[h*D + d, e] -> (H, D, E)
        self.w_out_hde = jnp.transpose(self.out_proj_weight).reshape(h, d, e)
        self.b_out = self.out_proj_bias.reshape(1, e)

    def __call__(self, query, key, value):
        # query/key/value: (T, B, E)
        t, b, e = query.shape
        h, d = self.num_heads, self.head_dim
        n = t * b

        # --- fused Q/K/V in-projection (single pallas_call) -----------------
        x = jnp.stack([query, key, value], axis=0).reshape(3, n, e)
        qkv = fused_qkv_projection(x, self.w_in_t, self.b_in)        # (3, N, E)

        # split heads (layout plumbing only): (3, T, B, H, D) -> (3, B, H, T, D)
        qkv = jnp.transpose(qkv.reshape(3, t, b, h, d), (0, 2, 3, 1, 4))
        qh, kh, vh = qkv[0], qkv[1], qkv[2]

        # --- attention + averaged weights + out-projection (one pallas_call) -
        r_bte, w_avg = attention_forward(
            qh, kh, vh, self.mask_f, self.w_out_hde, self.b_out, h)

        # back to time-first layout (T, B, E)
        r = jnp.transpose(r_bte, (1, 0, 2))
        return r, w_avg


# ----------------------------------------------------------------------------
# Demo
# ----------------------------------------------------------------------------

if __name__ == "__main__":
    T = 16        # temporal_scale == sequence length
    B = 2         # batch
    E = 64        # input_dim
    H = 8         # num_heads (>= 8 local heads as in the original mask builder)
    WINDOW = 3

    root = jax.random.PRNGKey(0)
    kq, kk, kv, kparams = jax.random.split(root, 4)
    query = jax.random.normal(kq, (T, B, E), jnp.float32)
    key = jax.random.normal(kk, (T, B, E), jnp.float32)
    value = jax.random.normal(kv, (T, B, E), jnp.float32)

    module = GlobalLocalAttention(
        input_dim=E, num_heads=H, dropout=0.0,
        temporal_scale=T, window_size=WINDOW, rng_key=kparams)

    r, w = module(query, key, value)
    jax.block_until_ready((r, w))

    assert r.shape == (T, B, E)
    assert w.shape == (B, T, T)
    assert bool(jnp.all(jnp.isfinite(r))) and bool(jnp.all(jnp.isfinite(w)))
    # rows of averaged attention weights sum to ~1 (approx reciprocal in softmax)
    assert bool(jnp.allclose(jnp.sum(w, axis=-1), 1.0, atol=2e-3))

    print("KERNEL_OK")
</pallas_src>

<mosaic_0001>
module attributes {stable_mosaic.version = 11 : i64} {
  func.func @_qkv_proj_kernel(%arg0: i32, %arg1: memref<1x32x64xf32, #tpu.memory_space<vmem>>, %arg2: memref<1x64x64xf32, #tpu.memory_space<vmem>>, %arg3: memref<1x1x64xf32, #tpu.memory_space<vmem>>, %arg4: memref<1x32x64xf32, #tpu.memory_space<vmem>>) attributes {dimension_semantics = [#tpu.dimension_semantics<parallel>], iteration_bounds = array<i64: 3>, scalar_prefetch = 0 : i64, scratch_operands = 0 : i64, tpu.core_type = #tpu.core_type<tc>, window_params = [{transform_indices = @transform_0, window_bounds = array<i64: 1, 32, 64>}, {transform_indices = @transform_1, window_bounds = array<i64: 1, 64, 64>}, {transform_indices = @transform_2, window_bounds = array<i64: 1, 1, 64>}, {transform_indices = @transform_3, window_bounds = array<i64: 1, 32, 64>}]} {
    %c0 = arith.constant 0 : index
    %c0_0 = arith.constant 0 : index
    %c0_1 = arith.constant 0 : index
    %0 = vector.load %arg1[%c0, %c0_0, %c0_1] : memref<1x32x64xf32, #tpu.memory_space<vmem>>, vector<1x32x64xf32>
    %1 = vector.shape_cast %0 : vector<1x32x64xf32> to vector<32x64xf32>
    %c0_2 = arith.constant 0 : index
    %c0_3 = arith.constant 0 : index
    %c0_4 = arith.constant 0 : index
    %2 = vector.load %arg2[%c0_2, %c0_3, %c0_4] : memref<1x64x64xf32, #tpu.memory_space<vmem>>, vector<1x64x64xf32>
    %3 = vector.shape_cast %2 : vector<1x64x64xf32> to vector<64x64xf32>
    %cst = arith.constant dense<0.000000e+00> : vector<32x64xf32>
    %4 = tpu.matmul %1, %3, %cst {dimension_numbers = #tpu.dot_dimension_numbers<[1], [0], [0], [1], [0, 0, 1, 1], [], []>} : vector<32x64xf32>, vector<64x64xf32>, vector<32x64xf32> -> vector<32x64xf32>
    %c0_5 = arith.constant 0 : index
    %c0_6 = arith.constant 0 : index
    %c0_7 = arith.constant 0 : index
    %5 = vector.load %arg3[%c0_5, %c0_6, %c0_7] : memref<1x1x64xf32, #tpu.memory_space<vmem>>, vector<1x1x64xf32>
    %6 = vector.shape_cast %5 : vector<1x1x64xf32> to vector<1x64xf32>
    %7 = vector.broadcast %6 : vector<1x64xf32> to vector<32x64xf32>
    %8 = arith.addf %4, %7 : vector<32x64xf32>
    %c0_8 = arith.constant 0 : index
    %c0_9 = arith.constant 0 : index
    %c0_10 = arith.constant 0 : index
    %9 = vector.load %arg4[%c0_8, %c0_9, %c0_10] : memref<1x32x64xf32, #tpu.memory_space<vmem>>, vector<1x32x64xf32>
    %10 = vector.shape_cast %9 : vector<1x32x64xf32> to vector<32x64xf32>
    %11 = vector.shape_cast %8 : vector<32x64xf32> to vector<1x32x64xf32>
    tpu.vector_store %arg4[%c0_8, %c0_9, %c0_10], %11 {strides = array<i32>} : memref<1x32x64xf32, #tpu.memory_space<vmem>>, vector<1x32x64xf32>,
    return
  }
  func.func @transform_0(%arg0: i32) -> (i32, i32, i32) {
    %c0_i32 = arith.constant 0 : i32
    %c0_i32_0 = arith.constant 0 : i32
    %c0_i32_1 = arith.constant 0 : i32
    return %arg0, %c0_i32, %c0_i32_0 : i32, i32, i32
  }
  func.func @transform_1(%arg0: i32) -> (i32, i32, i32) {
    %c0_i32 = arith.constant 0 : i32
    %c0_i32_0 = arith.constant 0 : i32
    %c0_i32_1 = arith.constant 0 : i32
    return %arg0, %c0_i32, %c0_i32_0 : i32, i32, i32
  }
  func.func @transform_2(%arg0: i32) -> (i32, i32, i32) {
    %c0_i32 = arith.constant 0 : i32
    %c0_i32_0 = arith.constant 0 : i32
    %c0_i32_1 = arith.constant 0 : i32
    return %arg0, %c0_i32, %c0_i32_0 : i32, i32, i32
  }
  func.func @transform_3(%arg0: i32) -> (i32, i32, i32) {
    %c0_i32 = arith.constant 0 : i32
    %c0_i32_0 = arith.constant 0 : i32
    %c0_i32_1 = arith.constant 0 : i32
    return %arg0, %c0_i32, %c0_i32_0 : i32, i32, i32
  }
}

</mosaic_0001>

<llo_original>
// kernel: tpu_custom_call.1
$region0: #{tpu_custom_call.1}
  #allocation0 [shape = 'u32[]', space=smem, size = 0x4, offset = 0x4, fixed_abs, tag = 'smem constant byte address 0x4 - core index']
  #allocation1 [shape = 'u32[144,128]{1,0:T(1,128)}', space=vmem, size = 0x12000, scoped, tag = 'internal scratch']
  %s0 = inlined_call_operand.hbm [shape: f32[3,32,64], index: 0, kind: input, shape index: {}]
  %s1 = inlined_call_operand.hbm [shape: f32[3,64,64], index: 1, kind: input, shape index: {}]
  %s2 = inlined_call_operand.vmem [shape: f32[3,1,64], index: 2, kind: input, shape index: {}]
  %s3 = inlined_call_operand.hbm [shape: f32[3,32,64], index: 3, kind: output, shape index: {}]
  %s4 = sld [smem:[#allocation0]]
  $region53: #{tpu_custom_call.1} parent=0
    _
  %s6 = ssub.s32 1, %s4
  %s7 = scalar_select 0, %s6, %s4
  $region1: #{tpu_custom_call.1} parent=0
    #allocation2 [shape = 'u8[32768]{0}', space=vmem, size = 0x8000, scoped, tag = 'input window, operand 0']
    #allocation3 [shape = 's32[2]{0}', space=sflag, size = 0x8, scoped, tag = 'scoped memory for tpu_custom_call.1']
    #allocation4 [shape = 's32[2]{0}', space=sflag, size = 0x8, scoped, tag = 'scoped memory for tpu_custom_call.1']
    #allocation5 [shape = 'u8[65536]{0}', space=vmem, size = 0x10000, scoped, tag = 'input window, operand 1']
    #allocation6 [shape = 's32[2]{0}', space=sflag, size = 0x8, scoped, tag = 'scoped memory for tpu_custom_call.1']
    #allocation7 [shape = 'u8[32768]{0}', space=vmem, size = 0x8000, scoped, tag = 'output window, operand 0']
    %8 = vsyncpa [#allocation3], 0
    %s9 = scalar_lea.sflag [#allocation3], 1
    %10 = vsyncpa %s9, 0
    %11 = vsyncpa [#allocation6], 0
    %s12 = scalar_lea.sflag [#allocation6], 1
    %13 = vsyncpa %s12, 0
    %14 = vsyncpa [#allocation4], 0
    %s15 = scalar_lea.sflag [#allocation4], 1
    %16 = vsyncpa %s15, 0
    loop: start=0, step=1, limit=5
    $region2: #{tpu_custom_call.1} parent=1 // loop_pre_header
      _
    $region3: #{tpu_custom_call.1} parent=1 // loop_header
      %s18 = sphi 0, %s22
      %p19 = scmp.ge.s32.totalorder %s18, 5
      %s28 = sphi 0, %s30
      %s31 = sphi 0, %s28
      %s32 = sphi 0, %s31
      %s48 = sphi 0, %s32
      %s54 = sphi 0, %s56
      %s57 = sphi 0, %s54
      %s58 = sphi 0, %s57
      %s74 = sphi 0, %s58
      %s80 = sphi 0, %s82
      %s83 = sphi 0, %s80
      %s84 = sphi 0, %s83
      %s100 = sphi 0, %s84
      %s106 = sphi 0, %s108
      %s109 = sphi 0, %s106
      %s110 = sphi 0, %s109
      %s126 = sphi 0, %s110
    $region4: #{tpu_custom_call.1} parent=1 // loop_header_branch
      %21 = sbr.rel (%p19) target = $region8
    $region5: #{tpu_custom_call.1} parent=1 // loop_body
      %s23 = ssub.s32 %s18, 1
      %s24 = ssub.s32 %s18, 2
      %s25 = sadd.s32 %s18, 1
      %s26 = ssub.s32 %s18, %s25
      %p27 = scmp.eq.s32.totalorder %s26, 0
      %s29 = sadd.s32 %s28, 1
      %s30 = scalar_select %p27, %s28, %s29
      %p33 = pneg %p27
      %p34 = scmp.eq.s32.totalorder %s18, 2
      %p35 = por %p33, %p34
      %p36 = scmp.ne.s32.totalorder %s28, %s31
      %p37 = scmp.eq.s32.totalorder %s18, 0
      %p38 = por %p36, %p37
      %p39 = scmp.ne.s32.totalorder %s28, %s31
      %p40 = scmp.eq.s32.totalorder %s23, 2
      %p41 = por %p39, %p40
      %p42 = scmp.ne.s32.totalorder %s31, %s32
      %p43 = scmp.eq.s32.totalorder %s23, 0
      %p44 = por %p42, %p43
      %p45 = scmp.ne.s32.totalorder %s31, %s32
      %p46 = scmp.eq.s32.totalorder %s24, 2
      %p47 = por %p45, %p46
      %p49 = scmp.ne.s32.totalorder %s32, %s48
      %p50 = scmp.eq.s32.totalorder %s24, 0
      %p51 = por %p49, %p50
      %s52 = ssub.s32 %s18, %s25
      %p53 = scmp.eq.s32.totalorder %s52, 0
      %s55 = sadd.s32 %s54, 1
      %s56 = scalar_select %p53, %s54, %s55
      %p59 = pneg %p53
      %p60 = scmp.eq.s32.totalorder %s18, 2
      %p61 = por %p59, %p60
      %p62 = scmp.ne.s32.totalorder %s54, %s57
      %p63 = scmp.eq.s32.totalorder %s18, 0
      %p64 = por %p62, %p63
      %p65 = scmp.ne.s32.totalorder %s54, %s57
      %p66 = scmp.eq.s32.totalorder %s23, 2
      %p67 = por %p65, %p66
      %p68 = scmp.ne.s32.totalorder %s57, %s58
      %p69 = scmp.eq.s32.totalorder %s23, 0
      %p70 = por %p68, %p69
      %p71 = scmp.ne.s32.totalorder %s57, %s58
      %p72 = scmp.eq.s32.totalorder %s24, 2
      %p73 = por %p71, %p72
      %p75 = scmp.ne.s32.totalorder %s58, %s74
      %p76 = scmp.eq.s32.totalorder %s24, 0
      %p77 = por %p75, %p76
      %s78 = ssub.s32 %s18, %s25
      %p79 = scmp.eq.s32.totalorder %s78, 0
      %s81 = sadd.s32 %s80, 1
      %s82 = scalar_select %p79, %s80, %s81
      %p85 = pneg %p79
      %p86 = scmp.eq.s32.totalorder %s18, 2
      %p87 = por %p85, %p86
      %p88 = scmp.ne.s32.totalorder %s80, %s83
      %p89 = scmp.eq.s32.totalorder %s18, 0
      %p90 = por %p88, %p89
      %p91 = scmp.ne.s32.totalorder %s80, %s83
      %p92 = scmp.eq.s32.totalorder %s23, 2
      %p93 = por %p91, %p92
      %p94 = scmp.ne.s32.totalorder %s83, %s84
      %p95 = scmp.eq.s32.totalorder %s23, 0
      %p96 = por %p94, %p95
      %p97 = scmp.ne.s32.totalorder %s83, %s84
      %p98 = scmp.eq.s32.totalorder %s24, 2
      %p99 = por %p97, %p98
      %p101 = scmp.ne.s32.totalorder %s84, %s100
      %p102 = scmp.eq.s32.totalorder %s24, 0
      %p103 = por %p101, %p102
      %s104 = ssub.s32 %s18, %s25
      %p105 = scmp.eq.s32.totalorder %s104, 0
      %s107 = sadd.s32 %s106, 1
      %s108 = scalar_select %p105, %s106, %s107
      %p111 = pneg %p105
      %p112 = scmp.eq.s32.totalorder %s18, 2
      %p113 = por %p111, %p112
      %p114 = scmp.ne.s32.totalorder %s106, %s109
      %p115 = scmp.eq.s32.totalorder %s18, 0
      %p116 = por %p114, %p115
      %p117 = scmp.ne.s32.totalorder %s106, %s109
      %p118 = scmp.eq.s32.totalorder %s23, 2
      %p119 = por %p117, %p118
      %p120 = scmp.ne.s32.totalorder %s109, %s110
      %p121 = scmp.eq.s32.totalorder %s23, 0
      %p122 = por %p120, %p121
      %p123 = scmp.ne.s32.totalorder %s109, %s110
      %p124 = scmp.eq.s32.totalorder %s24, 2
      %p125 = por %p123, %p124
      %p127 = scmp.ne.s32.totalorder %s110, %s126
      %p128 = scmp.eq.s32.totalorder %s24, 0
      %p129 = por %p127, %p128
      %p130 = scmp.le.s32.totalorder 1, %s18
      %p131 = scmp.lt.s32.totalorder %s18, 4
      %p132 = pnand %p130, %p131
      %p133 = pneg %p132
      // Predicated region
      $region9: #{tpu_custom_call.1} parent=5 // pred_check
        _
      $region10: #{tpu_custom_call.1} parent=5 // pred_check_branch
        %135 = sbr.rel (%p132) target = $region12
      $region11: #{tpu_custom_call.1} parent=5 // pred_region
        %s136 = ssub.s32 %s18, 1
      $region12: #{tpu_custom_call.1} parent=5 // pred_fallthru
        _
      %p137 = scmp.lt.s32.totalorder %s18, 3
      // Predicated region
      $region13: #{tpu_custom_call.1} parent=5 // pred_check
        %p138 = pneg %p137
      $region14: #{tpu_custom_call.1} parent=5 // pred_check_branch
        %140 = sbr.rel (%p138) target = $region16
      $region15: #{tpu_custom_call.1} parent=5 // pred_region
        // Predicated region
        $region17: #{tpu_custom_call.1} parent=15 // pred_check
          %p141 = pneg %p38
        $region18: #{tpu_custom_call.1} parent=15 // pred_check_branch
          %143 = sbr.rel (%p141) target = $region20
        $region19: #{tpu_custom_call.1} parent=15 // pred_region
          %s144 = sand.u32 %s28, 1
          %s145 = scalar_lea.sflag [#allocation3], %s144
          %s146 = sand.u32 %s28, 1
          %s147 = smul.addr %s146, 32
          %s148 = scalar_lea.vmem [#allocation2], %s147
          %s150 = ssub.s32 512, 512
          %151 = vsyncadd %s145, %s150
          %s152 = smul.addr %s18, 4
          %s153 = smul.addr %s152, 128
          %s154 = scalar_lea.hbm %s0, %s153
          %s155 = sshll.u32 %s148, 4
          %s156 = int_to_ptr.vmem [resolvable:$true] %s155
          %161 = dma.hbm_to_vmem [thread:$0]  %s154, 512, %s156, %s145, 128, 128, 8
        $region20: #{tpu_custom_call.1} parent=15 // pred_fallthru
          _
        // Predicated region
        $region21: #{tpu_custom_call.1} parent=15 // pred_check
          %p162 = pneg %p64
        $region22: #{tpu_custom_call.1} parent=15 // pred_check_branch
          %164 = sbr.rel (%p162) target = $region24
        $region23: #{tpu_custom_call.1} parent=15 // pred_region
          %s165 = sand.u32 %s54, 1
          %s166 = scalar_lea.sflag [#allocation6], %s165
          %s167 = sand.u32 %s54, 1
          %s168 = smul.addr %s167, 64
          %s169 = scalar_lea.vmem [#allocation5], %s168
          %s171 = ssub.s32 1024, 1024
          %172 = vsyncadd %s166, %s171
          %s173 = smul.addr %s18, 8
          %s174 = smul.addr %s173, 128
          %s175 = scalar_lea.hbm %s1, %s174
          %s176 = sshll.u32 %s169, 4
          %s177 = int_to_ptr.vmem [resolvable:$true] %s176
          %182 = dma.hbm_to_vmem [thread:$0]  %s175, 1024, %s177, %s166, 128, 128, 8
        $region24: #{tpu_custom_call.1} parent=15 // pred_fallthru
          _
        // Predicated region
        $region25: #{tpu_custom_call.1} parent=15 // pred_check
          %p183 = pneg %p90
        $region26: #{tpu_custom_call.1} parent=15 // pred_check_branch
          %185 = sbr.rel (%p183) target = $region28
        $region27: #{tpu_custom_call.1} parent=15 // pred_region
          %p186 = scmp.lt.s32.totalorder %s18, 2
          %s187 = scalar_select %p186, %s18, 2
          %s188 = scalar_lea.vmem %s2, %s187
        $region28: #{tpu_custom_call.1} parent=15 // pred_fallthru
          _
      $region16: #{tpu_custom_call.1} parent=5 // pred_fallthru
        _
      %p189 = scmp.le.s32.totalorder 1, %s18
      %p190 = scmp.lt.s32.totalorder %s18, 4
      %p191 = pnand %p189, %p190
      %p192 = pneg %p191
      // Predicated region
      $region29: #{tpu_custom_call.1} parent=5 // pred_check
        _
      $region30: #{tpu_custom_call.1} parent=5 // pred_check_branch
        %194 = sbr.rel (%p191) target = $region32
      $region31: #{tpu_custom_call.1} parent=5 // pred_region
        %s195 = ssub.s32 %s18, 1
        %s196 = sand.u32 %s31, 1
        %s197 = scalar_lea.sflag [#allocation3], %s196
        %s198 = sand.u32 %s31, 1
        %s199 = smul.addr %s198, 32
        %s200 = scalar_lea.vmem [#allocation2], %s199
        // Predicated region
        $region33: #{tpu_custom_call.1} parent=31 // pred_check
          %p201 = pneg %p44
        $region34: #{tpu_custom_call.1} parent=31 // pred_check_branch
          %203 = sbr.rel (%p201) target = $region36
        $region35: #{tpu_custom_call.1} parent=31 // pred_region
          %204 = dma.done %s197, 512
        $region36: #{tpu_custom_call.1} parent=31 // pred_fallthru
          _
        %s205 = sand.u32 %s57, 1
        %s206 = scalar_lea.sflag [#allocation6], %s205
        %s207 = sand.u32 %s57, 1
        %s208 = smul.addr %s207, 64
        %s209 = scalar_lea.vmem [#allocation5], %s208
        // Predicated region
        $region37: #{tpu_custom_call.1} parent=31 // pred_check
          %p210 = pneg %p70
        $region38: #{tpu_custom_call.1} parent=31 // pred_check_branch
          %212 = sbr.rel (%p210) target = $region40
        $region39: #{tpu_custom_call.1} parent=31 // pred_region
          %213 = dma.done %s206, 1024
        $region40: #{tpu_custom_call.1} parent=31 // pred_fallthru
          _
        %s214 = sand.u32 %s31, 1
        %s215 = scalar_lea.sflag [#allocation3], %s214
        %s216 = sand.u32 %s31, 1
        %s217 = smul.addr %s216, 32
        %s218 = scalar_lea.vmem [#allocation2], %s217
        %p219 = pneg %p44
        %p220 = pneg %p41
        %s221 = sand.u32 %s57, 1
        %s222 = scalar_lea.sflag [#allocation6], %s221
        %s223 = sand.u32 %s57, 1
        %s224 = smul.addr %s223, 64
        %s225 = scalar_lea.vmem [#allocation5], %s224
        %p226 = pneg %p70
        %p227 = pneg %p67
        %p228 = scmp.lt.s32.totalorder %s23, 2
        %s229 = scalar_select %p228, %s23, 2
        %s230 = scalar_lea.vmem %s2, %s229
        %p231 = pneg %p96
        %p232 = pneg %p93
        %p233 = pneg %p122
        %p234 = pneg %p119
        %s235 = sand.u32 %s109, 1
        %s236 = scalar_lea.sflag [#allocation4], %s235
        %s237 = sand.u32 %s109, 1
        %s238 = smul.addr %s237, 32
        %s239 = scalar_lea.vmem [#allocation7], %s238
        %p240 = scmp.lt.s32.totalorder %s23, 2
        %s241 = scalar_select %p240, %s23, 2
        %s242 = scalar_lea.vmem %s2, %s241
        %v243 = vld [vmem:[%s200] sm:$0xff]
        %v244 = vld [vmem:[%s200 + $0x8] sm:$0xff]
        %v245 = vld [vmem:[%s200 + $0x10] sm:$0xff]
        %v246 = vld [vmem:[%s200 + $0x18] sm:$0xff]
        %v247 = vld [vmem:[%s209] sm:$0xff]
        %v248 = vld [vmem:[%s209 + $0x8] sm:$0xff]
        %v249 = vld [vmem:[%s209 + $0x10] sm:$0xff]
        %v250 = vld [vmem:[%s209 + $0x18] sm:$0xff]
        %v251 = vld [vmem:[%s209 + $0x20] sm:$0xff]
        %v252 = vld [vmem:[%s209 + $0x28] sm:$0xff]
        %v253 = vld [vmem:[%s209 + $0x30] sm:$0xff]
        %v254 = vld [vmem:[%s209 + $0x38] sm:$0xff]
        %v255 = vld [vmem:[%s242] sm:$0x1]
        %v257 = vlaneseq
        %v258 = vshrl.u32 %v257, 7
        %v259 = vsub.s32 0, %v258
        %v260 = vrot.slane %v255, %v259
        %vm262 = vcmask 523264
        %v264 = vsel %vm262, %v243, 0
        %v267 = vsel %vm262, %v244, 0
        %v270 = vsel %vm262, %v245, 0
        %v273 = vsel %vm262, %v246, 0
        %275 = vmatprep.subr.mxu0 0.0
        %276 = vmatpush1.msra.mxu0 %v247
        %277 = vmatprep.subr.mxu0 0.0
        %278 = vmatpush1.msra.mxu0 %v248
        %279 = vmatprep.subr.mxu0 0.0
        %280 = vmatpush1.msra.mxu0 %v249
        %281 = vmatprep.subr.mxu0 0.0
        %282 = vmatpush1.msra.mxu0 %v250
        %283 = vmatprep.subr.mxu0 0.0
        %284 = vmatpush1.msra.mxu0 %v251
        %285 = vmatprep.subr.mxu0 0.0
        %286 = vmatpush1.msra.mxu0 %v252
        %287 = vmatprep.subr.mxu0 0.0
        %288 = vmatpush1.msra.mxu0 %v253
        %289 = vmatprep.subr.mxu0 0.0
        %290 = vmatpush1.msra.mxu0 %v254
        %291 = vmatprep.subr.mxu0 0.0
        %292 = vmatpush1.msra.mxu0 0.0
        %293 = vmatprep.subr.mxu0 0.0
        %294 = vmatpush1.msra.mxu0 0.0
        %295 = vmatprep.subr.mxu0 0.0
        %296 = vmatpush1.msra.mxu0 0.0
        %297 = vmatprep.subr.mxu0 0.0
        %298 = vmatpush1.msra.mxu0 0.0
        %299 = vmatprep.subr.mxu0 0.0
        %300 = vmatpush1.msra.mxu0 0.0
        %301 = vmatprep.subr.mxu0 0.0
        %302 = vmatpush1.msra.mxu0 0.0
        %303 = vmatprep.subr.mxu0 0.0
        %304 = vmatpush1.msra.mxu0 0.0
        %305 = vmatprep.subr.mxu0 0.0
        %306 = vmatpush1.msra.mxu0 0.0
        %307 = vmatprep.subr.mxu0 0.0
        %308 = vmatpush1.msra.mxu0 0.0
        %309 = vmatprep.subr.mxu0 0.0
        %310 = vmatpush1.msra.mxu0 0.0
        %311 = vmatprep.subr.mxu0 0.0
        %312 = vmatpush1.msra.mxu0 0.0
        %313 = vmatprep.subr.mxu0 0.0
        %314 = vmatpush1.msra.mxu0 0.0
        %315 = vmatprep.subr.mxu0 0.0
        %316 = vmatpush1.msra.mxu0 0.0
        %317 = vmatprep.subr.mxu0 0.0
        %318 = vmatpush1.msra.mxu0 0.0
        %319 = vmatprep.subr.mxu0 0.0
        %320 = vmatpush1.msra.mxu0 0.0
        %321 = vmatprep.subr.mxu0 0.0
        %322 = vmatpush1.msra.mxu0 0.0
        %323 = vmatprep.subr.mxu0 0.0
        %324 = vmatpush1.msra.mxu0 0.0
        %325 = vmatprep.subr.mxu0 0.0
        %326 = vmatpush1.msra.mxu0 0.0
        %327 = vmatprep.subr.mxu0 0.0
        %328 = vmatpush1.msra.mxu0 0.0
        %329 = vmatprep.subr.mxu0 0.0
        %330 = vmatpush1.msra.mxu0 0.0
        %331 = vmatprep.subr.mxu0 0.0
        %332 = vmatpush1.msra.mxu0 0.0
        %333 = vmatprep.subr.mxu0 0.0
        %334 = vmatpush1.msra.mxu0 0.0
        %335 = vmatprep.subr.mxu0 0.0
        %336 = vmatpush1.msra.mxu0 0.0
        %337 = vmatprep.subr.mxu0 0.0
        %338 = vmatpush1.msra.mxu0 0.0
        %339 = vmatprep.mubr.f32.mxu0 0.0
        %340 = vmatmul.mubr.f32.gmra.mrb[0].mxu0 %v264
        %v341 = vpop.f32.mrb[0].mxu0
        %v342 = vadd.f32 %v260, %v341
        %v343 = vpop.f32.mrb[0].mxu0
        %344 = vmatprep.mubr.f32.mxu0 0.0
        %345 = vmatmul.mubr.f32.gmra.mrb[0].mxu0 %v267
        %v346 = vpop.f32.mrb[0].mxu0
        %v347 = vadd.f32 %v260, %v346
        %v348 = vpop.f32.mrb[0].mxu0
        %349 = vmatprep.mubr.f32.mxu0 0.0
        %350 = vmatmul.mubr.f32.gmra.mrb[0].mxu0 %v270
        %v351 = vpop.f32.mrb[0].mxu0
        %v352 = vadd.f32 %v260, %v351
        %v353 = vpop.f32.mrb[0].mxu0
        %354 = vmatprep.mubr.f32.mxu0 0.0
        %355 = vmatmul.mubr.f32.gmra.mrb[0].mxu0 %v273
        %v356 = vpop.f32.mrb[0].mxu0
        %v357 = vadd.f32 %v260, %v356
        %v358 = vpop.f32.mrb[0].mxu0
        %359 = vdwg.mxu0
        %360 = vst.msk [vmem:[%s239] sm:$0xff] %vm262, %v342
        %361 = vst.msk [vmem:[%s239 + $0x8] sm:$0xff] %vm262, %v347
        %362 = vst.msk [vmem:[%s239 + $0x10] sm:$0xff] %vm262, %v352
        %363 = vst.msk [vmem:[%s239 + $0x18] sm:$0xff] %vm262, %v357
        %s364 = sand.u32 %s109, 1
        %s365 = scalar_lea.sflag [#allocation4], %s364
        %s366 = sand.u32 %s109, 1
        %s367 = smul.addr %s366, 32
        %s368 = scalar_lea.vmem [#allocation7], %s367
        // Predicated region
        $region41: #{tpu_custom_call.1} parent=31 // pred_check
          %p369 = pneg %p119
        $region42: #{tpu_custom_call.1} parent=31 // pred_check_branch
          %371 = sbr.rel (%p369) target = $region44
        $region43: #{tpu_custom_call.1} parent=31 // pred_region
          %s373 = ssub.s32 512, 512
          %374 = vsyncadd %s365, %s373
          %s375 = smul.addr %s23, 4
          %s376 = smul.addr %s375, 128
          %s377 = scalar_lea.hbm %s3, %s376
          %s378 = sshll.u32 %s368, 4
          %s379 = int_to_ptr.vmem [resolvable:$true] %s378
          %384 = dma.vmem_to_hbm [thread:$0]  %s379, 512, %s377, %s365, 128, 128, 8
        $region44: #{tpu_custom_call.1} parent=31 // pred_fallthru
          _
      $region32: #{tpu_custom_call.1} parent=5 // pred_fallthru
        _
      %p385 = scmp.le.s32.totalorder 2, %s18
      // Predicated region
      $region45: #{tpu_custom_call.1} parent=5 // pred_check
        %p386 = pneg %p385
      $region46: #{tpu_custom_call.1} parent=5 // pred_check_branch
        %388 = sbr.rel (%p386) target = $region48
      $region47: #{tpu_custom_call.1} parent=5 // pred_region
        %s389 = ssub.s32 %s18, 2
        // Predicated region
        $region49: #{tpu_custom_call.1} parent=47 // pred_check
          %p390 = pneg %p125
        $region50: #{tpu_custom_call.1} parent=47 // pred_check_branch
          %392 = sbr.rel (%p390) target = $region52
        $region51: #{tpu_custom_call.1} parent=47 // pred_region
          %s393 = sand.u32 %s110, 1
          %s394 = scalar_lea.sflag [#allocation4], %s393
          %s395 = sand.u32 %s110, 1
          %s396 = smul.addr %s395, 32
          %s397 = scalar_lea.vmem [#allocation7], %s396
          %398 = dma.done %s394, 512
        $region52: #{tpu_custom_call.1} parent=47 // pred_fallthru
          _
      $region48: #{tpu_custom_call.1} parent=5 // pred_fallthru
        _
    $region6: #{tpu_custom_call.1} parent=1 // loop_footer
      %s22 = sadd.s32 1, %s18
    $region7: #{tpu_custom_call.1} parent=1 // loop_footer_branch
      %17 = sbr.rel target = $region3
    $region8: #{tpu_custom_call.1} parent=1 // loop_exit
      _
    %399 = vsyncpa [#allocation3], 1
    %s400 = scalar_lea.sflag [#allocation3], 1
    %401 = vsyncpa %s400, 1
    %402 = vsyncpa [#allocation6], 1
    %s403 = scalar_lea.sflag [#allocation6], 1
    %404 = vsyncpa %s403, 1
    %405 = vsyncpa [#allocation4], 1
    %s406 = scalar_lea.sflag [#allocation4], 1
    %407 = vsyncpa %s406, 1

</llo_original>
